<compile_context>
chip_gen: v7x
topology: tpu7x:2x2x1
jax: 0.10.0
libtpu: 0.0.40
codegen_flags: <defaults>
</compile_context>

<pallas_src>
from functools import partial

import numpy as np

import jax
import jax.numpy as jnp
from jax.experimental import pallas as pl
from jax.experimental.pallas import tpu as pltpu


def _conv_out(n):
    # VALID padding, kernel 3, stride 2
    return (n - 3) // 2 + 1


def _round_up(n, m):
    return ((n + m - 1) // m) * m


# ------------------------------ Pallas kernel ------------------------------ #
def _subsample_kernel(x_ref, w1e_ref, w1oa_ref, w1ob_ref, b1_ref,
                      w2a_ref, w2b_ref, b2_ref, o_ref, h_ref,
                      *, F, T1e, T1o, T2, CF1p):
    """One batch element per grid step.

    x_ref  : (Tp, 4F) bf16   mod-4 deinterleaved, time-major input
                              (col r*F+f of row m == input time 4m+r, feat f)
    w1e_ref: (3F, CF1p) bf16  conv1 taps 0,1,2 stacked along K (even out rows)
    w1oa   : (2F, CF1p) bf16  conv1 taps 0,1   (odd out rows, phases 2,3)
    w1ob   : (F,  CF1p) bf16  conv1 tap  2     (odd out rows, next-row phase 0)
    b1_ref : (1, CF1p) f32
    w2a    : (2*CF1p, CF2p) bf16  conv2 taps 0,1 stacked along K
    w2b    : (CF1p,  CF2p) bf16   conv2 tap 2
    b2_ref : (1, CF2p) f32
    o_ref  : (T2, CF2p) f32   output block, PyTorch (c*F2+f2) column layout
    h_ref  : (T1e, 2*CF1p) bf16 scratch: even time rows in cols [0:CF1p),
                                          odd time rows in cols [CF1p:2*CF1p)
    """
    # ---- conv1 + bias + ReLU -> bf16 VMEM scratch -------------------------
    # even output rows h[2m]: input rows 4m, 4m+1, 4m+2 == lanes [0:3F) of row m
    xe = x_ref[0:T1e, 0:3 * F]                                   # (T1e, 3F)
    acc_e = jnp.dot(xe, w1e_ref[...], preferred_element_type=jnp.float32)
    h_ref[:, 0:CF1p] = jnp.maximum(acc_e + b1_ref[...], 0.0).astype(h_ref.dtype)

    # odd output rows h[2m+1]: input rows 4m+2, 4m+3 (lanes [2F:4F) of row m)
    #                          and 4m+4 (lanes [0:F) of row m+1)
    xo_a = x_ref[0:T1o, 2 * F:4 * F]                             # (T1o, 2F)
    xo_b = x_ref[1:T1o + 1, 0:F]                                 # (T1o, F)
    acc_o = jnp.dot(xo_a, w1oa_ref[...], preferred_element_type=jnp.float32)
    acc_o = acc_o + jnp.dot(xo_b, w1ob_ref[...], preferred_element_type=jnp.float32)
    h_ref[0:T1o, CF1p:2 * CF1p] = jnp.maximum(acc_o + b1_ref[...],
                                              0.0).astype(h_ref.dtype)

    # ---- conv2 + bias + ReLU, accumulated directly into the output block --
    # out[t2] uses h[2t2] (even cols) & h[2t2+1] (odd cols) from scratch row
    # t2, plus h[2t2+2] (even cols) from scratch row t2+1.
    o_ref[...] = jnp.dot(h_ref[0:T2, :], w2a_ref[...],
                         preferred_element_type=jnp.float32)
    o_ref[...] += jnp.dot(h_ref[1:T2 + 1, 0:CF1p], w2b_ref[...],
                          preferred_element_type=jnp.float32)
    o_ref[...] = jnp.maximum(o_ref[...] + b2_ref[...], 0.0)


# ------------------------- wrapper-side weight prep ------------------------ #
def _banded_weights(params, F, C, F1, F2, CF1, CF2, CF1p, CF2p):
    """Fold feature-axis conv taps into lane-padded, tap-fused bf16 operands."""
    w1, b1 = params["w1"], params["b1"]       # (C,1,3,3), (C,)
    w2, b2 = params["w2"], params["b2"]       # (C,C,3,3), (C,)

    # P1[ki, f, f1] = 1 iff f == 2*f1 + ki  (static 0/1 tap selector, conv1)
    p1 = np.zeros((3, F, F1), np.float32)
    for ki in range(3):
        p1[ki, 2 * np.arange(F1) + ki, np.arange(F1)] = 1.0
    # A1[kj][f, c*F1 + f1] = w1[c, 0, f - 2*f1, kj]
    a1 = jnp.einsum("ckj,kfg->jfcg", w1[:, 0], p1).reshape(3, F, CF1)
    a1 = jnp.pad(a1, ((0, 0), (0, 0), (0, CF1p - CF1)))
    b1c = jnp.pad(jnp.repeat(b1, F1), (0, CF1p - CF1)).reshape(1, CF1p)

    # P2[ki, f1, f2] = 1 iff f1 == 2*f2 + ki  (conv2)
    p2 = np.zeros((3, F1, F2), np.float32)
    for ki in range(3):
        p2[ki, 2 * np.arange(F2) + ki, np.arange(F2)] = 1.0
    # A2[kj][ci*F1 + f1, co*F2 + f2] = w2[co, ci, f1 - 2*f2, kj]
    a2 = jnp.einsum("oikj,kfg->jifog", w2, p2).reshape(3, CF1, CF2)
    a2 = jnp.pad(a2, ((0, 0), (0, CF1p - CF1), (0, CF2p - CF2)))
    b2c = jnp.pad(jnp.repeat(b2, F2), (0, CF2p - CF2)).reshape(1, CF2p)

    # Tap-fused MXU operands, bf16 (f32 accumulation in the kernel).
    w1e = a1.reshape(3 * F, CF1p).astype(jnp.bfloat16)        # taps 0,1,2
    w1oa = a1[:2].reshape(2 * F, CF1p).astype(jnp.bfloat16)   # taps 0,1
    w1ob = a1[2].astype(jnp.bfloat16)                          # tap  2
    w2a = a2[:2].reshape(2 * CF1p, CF2p).astype(jnp.bfloat16)  # taps 0,1
    w2b = a2[2].astype(jnp.bfloat16)                           # tap  2
    return w1e, w1oa, w1ob, b1c, w2a, w2b, b2c


# --------------------------------- forward --------------------------------- #
@jax.jit
def subsampling_forward(spectrogram, params):
    """spectrogram: (B, F, T) f32 -> (B, T2, C*F2) f32 (matches PyTorch)."""
    B, F, T = spectrogram.shape
    assert F >= 7 and T >= 7, "need at least 7 features / 7 frames"
    C = params["w1"].shape[0]

    F1, F2 = _conv_out(F), _conv_out(_conv_out(F))
    T1, T2 = _conv_out(T), _conv_out(_conv_out(T))
    T1e, T1o = (T1 + 1) // 2, T1 // 2          # even / odd conv1 output rows
    Tp = -(-T // 4)                            # ceil(T / 4)
    CF1, CF2 = C * F1, C * F2
    CF1p, CF2p = _round_up(CF1, 128), _round_up(CF2, 128)   # lane-dense
    FourF = 4 * F

    w1e, w1oa, w1ob, b1c, w2a, w2b, b2c = _banded_weights(
        params, F, C, F1, F2, CF1, CF2, CF1p, CF2p)

    # Layout plumbing (one XLA pass): time-major + mod-4 deinterleave along
    # lanes so every conv tap inside the kernel is a unit-stride slice.
    x_t = jnp.transpose(spectrogram, (0, 2, 1))               # (B, T, F)
    x_t = jnp.pad(x_t, ((0, 0), (0, 4 * Tp - T), (0, 0)))
    x_quad = x_t.reshape(B, Tp, FourF).astype(jnp.bfloat16)   # (B, Tp, 4F)

    kernel = partial(_subsample_kernel,
                     F=F, T1e=T1e, T1o=T1o, T2=T2, CF1p=CF1p)

    flops = 2 * B * (T1 * 3 * F * CF1p + T2 * 3 * CF1p * CF2p)
    w_bytes = 2 * (w1e.size + w1oa.size + w1ob.size + w2a.size + w2b.size)
    bytes_accessed = (2 * B * Tp * FourF + 4 * B * T2 * CF2p
                      + w_bytes + 4 * (CF1p + CF2p))

    # Explicit scoped-VMEM budget with headroom (capped at 64 MiB so the
    # request is valid on v7x).  For shapes that exceed it, the time-tiling
    # TODO above is the real fix.
    vmem_est = (2 * 2 * Tp * FourF                 # x block, 2 buffers, bf16
                + 2 * 4 * T2 * CF2p                # out block, 2 buffers, f32
                + 2 * w_bytes                      # weights (double-buffered)
                + 2 * T1e * 2 * CF1p               # h scratch, bf16
                + 4 * (T1e + T1o + T2) * max(CF1p, CF2p))   # f32 acc temps
    vmem_limit = int(min(64 * 2**20, max(32 * 2**20, 2 * vmem_est)))

    out_padded = pl.pallas_call(
        kernel,
        out_shape=jax.ShapeDtypeStruct((B, T2, CF2p), jnp.float32),
        grid_spec=pltpu.PrefetchScalarGridSpec(
            num_scalar_prefetch=0,
            grid=(B,),
            in_specs=[
                pl.BlockSpec((None, Tp, FourF), lambda b: (b, 0, 0)),   # x
                pl.BlockSpec((3 * F, CF1p), lambda b: (0, 0)),          # w1e
                pl.BlockSpec((2 * F, CF1p), lambda b: (0, 0)),          # w1oa
                pl.BlockSpec((F, CF1p), lambda b: (0, 0)),              # w1ob
                pl.BlockSpec((1, CF1p), lambda b: (0, 0)),              # b1
                pl.BlockSpec((2 * CF1p, CF2p), lambda b: (0, 0)),       # w2a
                pl.BlockSpec((CF1p, CF2p), lambda b: (0, 0)),           # w2b
                pl.BlockSpec((1, CF2p), lambda b: (0, 0)),              # b2
            ],
            out_specs=pl.BlockSpec((None, T2, CF2p), lambda b: (b, 0, 0)),
            scratch_shapes=[pltpu.VMEM((T1e, 2 * CF1p), jnp.bfloat16)],
        ),
        compiler_params=pltpu.CompilerParams(
            dimension_semantics=("parallel",),      # pipeline + megacore over B
            vmem_limit_bytes=vmem_limit,
        ),
        cost_estimate=pl.CostEstimate(
            flops=flops, transcendentals=0, bytes_accessed=bytes_accessed),
    )(x_quad, w1e, w1oa, w1ob, b1c, w2a, w2b, b2c)

    # Strip the lane padding (one cheap XLA slice).
    return out_padded[:, :, :CF2]


# ---------------------------- reference (lax) ------------------------------ #
def _reference_forward(spectrogram, params):
    x = spectrogram[:, None, :, :]                        # NCHW (B,1,F,T)
    dn = jax.lax.conv_dimension_numbers(x.shape, params["w1"].shape,
                                        ("NCHW", "OIHW", "NCHW"))
    x = jax.lax.conv_general_dilated(x, params["w1"], (2, 2), "VALID",
                                     dimension_numbers=dn)
    x = jax.nn.relu(x + params["b1"][None, :, None, None])
    dn2 = jax.lax.conv_dimension_numbers(x.shape, params["w2"].shape,
                                         ("NCHW", "OIHW", "NCHW"))
    x = jax.lax.conv_general_dilated(x, params["w2"], (2, 2), "VALID",
                                     dimension_numbers=dn2)
    x = jax.nn.relu(x + params["b2"][None, :, None, None])
    B, C, F2, T2 = x.shape
    return jnp.transpose(x, (0, 3, 1, 2)).reshape(B, T2, C * F2)


# ----------------------------------- main ----------------------------------- #
if __name__ == "__main__":
    B, F, T = 2, 16, 16
    n_channels = 4

    key = jax.random.PRNGKey(0)
    k_x, k_w1, k_b1, k_w2, k_b2 = jax.random.split(key, 5)

    spectrogram = jax.random.normal(k_x, (B, F, T), dtype=jnp.float32)
    params = {
        # PyTorch-shaped weights: (Cout, Cin, 3, 3)
        "w1": 0.1 * jax.random.normal(k_w1, (n_channels, 1, 3, 3), jnp.float32),
        "b1": 0.1 * jax.random.normal(k_b1, (n_channels,), jnp.float32),
        "w2": 0.1 * jax.random.normal(k_w2, (n_channels, n_channels, 3, 3),
                                      jnp.float32),
        "b2": 0.1 * jax.random.normal(k_b2, (n_channels,), jnp.float32),
    }

    out = jax.block_until_ready(subsampling_forward(spectrogram, params))
    ref = jax.block_until_ready(_reference_forward(spectrogram, params))

    assert out.shape == ref.shape, (out.shape, ref.shape)
    # bf16 MXU operands (f32 accumulation) -> loosen tolerance vs f32 reference.
    assert jnp.allclose(out, ref, atol=2e-2, rtol=2e-2), "mismatch vs reference"

    print("KERNEL_OK")
</pallas_src>

<mosaic_0001>
module attributes {stable_mosaic.version = 11 : i64} {
  func.func @_subsample_kernel(%arg0: i32, %arg1: memref<1x4x64xbf16, #tpu.memory_space<vmem>>, %arg2: memref<48x128xbf16, #tpu.memory_space<vmem>>, %arg3: memref<32x128xbf16, #tpu.memory_space<vmem>>, %arg4: memref<16x128xbf16, #tpu.memory_space<vmem>>, %arg5: memref<1x128xf32, #tpu.memory_space<vmem>>, %arg6: memref<256x128xbf16, #tpu.memory_space<vmem>>, %arg7: memref<128x128xbf16, #tpu.memory_space<vmem>>, %arg8: memref<1x128xf32, #tpu.memory_space<vmem>>, %arg9: memref<1x3x128xf32, #tpu.memory_space<vmem>>, %arg10: memref<4x256xbf16, #tpu.memory_space<vmem>>) attributes {dimension_semantics = [#tpu.dimension_semantics<parallel>], iteration_bounds = array<i64: 2>, scalar_prefetch = 0 : i64, scratch_operands = 1 : i64, tpu.core_type = #tpu.core_type<tc>, window_params = [{transform_indices = @transform_0, window_bounds = array<i64: 1, 4, 64>}, {pipeline_mode = #tpu.pipeline_mode<synchronous>, transform_indices = @transform_1, window_bounds = array<i64: 48, 128>}, {pipeline_mode = #tpu.pipeline_mode<synchronous>, transform_indices = @transform_2, window_bounds = array<i64: 32, 128>}, {pipeline_mode = #tpu.pipeline_mode<synchronous>, transform_indices = @transform_3, window_bounds = array<i64: 16, 128>}, {pipeline_mode = #tpu.pipeline_mode<synchronous>, transform_indices = @transform_4, window_bounds = array<i64: 1, 128>}, {pipeline_mode = #tpu.pipeline_mode<synchronous>, transform_indices = @transform_5, window_bounds = array<i64: 256, 128>}, {pipeline_mode = #tpu.pipeline_mode<synchronous>, transform_indices = @transform_6, window_bounds = array<i64: 128, 128>}, {pipeline_mode = #tpu.pipeline_mode<synchronous>, transform_indices = @transform_7, window_bounds = array<i64: 1, 128>}, {transform_indices = @transform_8, window_bounds = array<i64: 1, 3, 128>}]} {
    %c0 = arith.constant 0 : index
    %c0_0 = arith.constant 0 : index
    %c0_1 = arith.constant 0 : index
    %0 = vector.load %arg1[%c0, %c0_0, %c0_1] : memref<1x4x64xbf16, #tpu.memory_space<vmem>>, vector<1x4x48xbf16>
    %1 = vector.shape_cast %0 : vector<1x4x48xbf16> to vector<4x48xbf16>
    %c0_2 = arith.constant 0 : index
    %c0_3 = arith.constant 0 : index
    %2 = vector.load %arg2[%c0_2, %c0_3] : memref<48x128xbf16, #tpu.memory_space<vmem>>, vector<48x128xbf16>
    %cst = arith.constant dense<0.000000e+00> : vector<4x128xf32>
    %3 = tpu.matmul %1, %2, %cst {dimension_numbers = #tpu.dot_dimension_numbers<[1], [0], [0], [1], [0, 0, 1, 1], [], []>} : vector<4x48xbf16>, vector<48x128xbf16>, vector<4x128xf32> -> vector<4x128xf32>
    %c0_4 = arith.constant 0 : index
    %c0_5 = arith.constant 0 : index
    %4 = vector.load %arg5[%c0_4, %c0_5] : memref<1x128xf32, #tpu.memory_space<vmem>>, vector<1x128xf32>
    %5 = vector.broadcast %4 : vector<1x128xf32> to vector<4x128xf32>
    %6 = arith.addf %3, %5 : vector<4x128xf32>
    %cst_6 = arith.constant 0.000000e+00 : f32
    %7 = vector.broadcast %cst_6 : f32 to vector<4x128xf32>
    %8 = arith.maximumf %6, %7 : vector<4x128xf32>
    %9 = arith.truncf %8 : vector<4x128xf32> to vector<4x128xbf16>
    %c0_7 = arith.constant 0 : index
    %c0_8 = arith.constant 0 : index
    %10 = vector.load %arg10[%c0_7, %c0_8] : memref<4x256xbf16, #tpu.memory_space<vmem>>, vector<4x128xbf16>
    tpu.vector_store %arg10[%c0_7, %c0_8], %9 {strides = array<i32>} : memref<4x256xbf16, #tpu.memory_space<vmem>>, vector<4x128xbf16>,
    %c0_9 = arith.constant 0 : index
    %c0_10 = arith.constant 0 : index
    %c32 = arith.constant 32 : index
    %11 = vector.load %arg1[%c0_9, %c0_10, %c32] : memref<1x4x64xbf16, #tpu.memory_space<vmem>>, vector<1x3x32xbf16>
    %12 = vector.shape_cast %11 : vector<1x3x32xbf16> to vector<3x32xbf16>
    %c0_11 = arith.constant 0 : index
    %c1 = arith.constant 1 : index
    %c0_12 = arith.constant 0 : index
    %13 = vector.load %arg1[%c0_11, %c1, %c0_12] : memref<1x4x64xbf16, #tpu.memory_space<vmem>>, vector<1x3x16xbf16>
    %14 = vector.shape_cast %13 : vector<1x3x16xbf16> to vector<3x16xbf16>
    %c0_13 = arith.constant 0 : index
    %c0_14 = arith.constant 0 : index
    %15 = vector.load %arg3[%c0_13, %c0_14] : memref<32x128xbf16, #tpu.memory_space<vmem>>, vector<32x128xbf16>
    %cst_15 = arith.constant dense<0.000000e+00> : vector<3x128xf32>
    %16 = tpu.matmul %12, %15, %cst_15 {dimension_numbers = #tpu.dot_dimension_numbers<[1], [0], [0], [1], [0, 0, 1, 1], [], []>} : vector<3x32xbf16>, vector<32x128xbf16>, vector<3x128xf32> -> vector<3x128xf32>
    %c0_16 = arith.constant 0 : index
    %c0_17 = arith.constant 0 : index
    %17 = vector.load %arg4[%c0_16, %c0_17] : memref<16x128xbf16, #tpu.memory_space<vmem>>, vector<16x128xbf16>
    %cst_18 = arith.constant dense<0.000000e+00> : vector<3x128xf32>
    %18 = tpu.matmul %14, %17, %cst_18 {dimension_numbers = #tpu.dot_dimension_numbers<[1], [0], [0], [1], [0, 0, 1, 1], [], []>} : vector<3x16xbf16>, vector<16x128xbf16>, vector<3x128xf32> -> vector<3x128xf32>
    %19 = arith.addf %16, %18 : vector<3x128xf32>
    %c0_19 = arith.constant 0 : index
    %c0_20 = arith.constant 0 : index
    %20 = vector.load %arg5[%c0_19, %c0_20] : memref<1x128xf32, #tpu.memory_space<vmem>>, vector<1x128xf32>
    %21 = vector.broadcast %20 : vector<1x128xf32> to vector<3x128xf32>
    %22 = arith.addf %19, %21 : vector<3x128xf32>
    %cst_21 = arith.constant 0.000000e+00 : f32
    %23 = vector.broadcast %cst_21 : f32 to vector<3x128xf32>
    %24 = arith.maximumf %22, %23 : vector<3x128xf32>
    %25 = arith.truncf %24 : vector<3x128xf32> to vector<3x128xbf16>
    %c0_22 = arith.constant 0 : index
    %c128 = arith.constant 128 : index
    %26 = vector.load %arg10[%c0_22, %c128] : memref<4x256xbf16, #tpu.memory_space<vmem>>, vector<3x128xbf16>
    tpu.vector_store %arg10[%c0_22, %c128], %25 {strides = array<i32>} : memref<4x256xbf16, #tpu.memory_space<vmem>>, vector<3x128xbf16>,
    %c0_23 = arith.constant 0 : index
    %c0_24 = arith.constant 0 : index
    %27 = vector.load %arg10[%c0_23, %c0_24] : memref<4x256xbf16, #tpu.memory_space<vmem>>, vector<3x256xbf16>
    %c0_25 = arith.constant 0 : index
    %c0_26 = arith.constant 0 : index
    %28 = vector.load %arg6[%c0_25, %c0_26] : memref<256x128xbf16, #tpu.memory_space<vmem>>, vector<256x128xbf16>
    %cst_27 = arith.constant dense<0.000000e+00> : vector<3x128xf32>
    %29 = tpu.matmul %27, %28, %cst_27 {dimension_numbers = #tpu.dot_dimension_numbers<[1], [0], [0], [1], [0, 0, 1, 1], [], []>} : vector<3x256xbf16>, vector<256x128xbf16>, vector<3x128xf32> -> vector<3x128xf32>
    %c0_28 = arith.constant 0 : index
    %c0_29 = arith.constant 0 : index
    %c0_30 = arith.constant 0 : index
    %30 = vector.load %arg9[%c0_28, %c0_29, %c0_30] : memref<1x3x128xf32, #tpu.memory_space<vmem>>, vector<1x3x128xf32>
    %31 = vector.shape_cast %30 : vector<1x3x128xf32> to vector<3x128xf32>
    %32 = vector.shape_cast %29 : vector<3x128xf32> to vector<1x3x128xf32>
    tpu.vector_store %arg9[%c0_28, %c0_29, %c0_30], %32 {strides = array<i32>} : memref<1x3x128xf32, #tpu.memory_space<vmem>>, vector<1x3x128xf32>,
    %c0_31 = arith.constant 0 : index
    %c0_32 = arith.constant 0 : index
    %c0_33 = arith.constant 0 : index
    %33 = vector.load %arg9[%c0_31, %c0_32, %c0_33] : memref<1x3x128xf32, #tpu.memory_space<vmem>>, vector<1x3x128xf32>
    %34 = vector.shape_cast %33 : vector<1x3x128xf32> to vector<3x128xf32>
    %c1_34 = arith.constant 1 : index
    %c0_35 = arith.constant 0 : index
    %35 = vector.load %arg10[%c1_34, %c0_35] : memref<4x256xbf16, #tpu.memory_space<vmem>>, vector<3x128xbf16>
    %c0_36 = arith.constant 0 : index
    %c0_37 = arith.constant 0 : index
    %36 = vector.load %arg7[%c0_36, %c0_37] : memref<128x128xbf16, #tpu.memory_space<vmem>>, vector<128x128xbf16>
    %cst_38 = arith.constant dense<0.000000e+00> : vector<3x128xf32>
    %37 = tpu.matmul %35, %36, %cst_38 {dimension_numbers = #tpu.dot_dimension_numbers<[1], [0], [0], [1], [0, 0, 1, 1], [], []>} : vector<3x128xbf16>, vector<128x128xbf16>, vector<3x128xf32> -> vector<3x128xf32>
    %38 = arith.addf %34, %37 : vector<3x128xf32>
    %c0_39 = arith.constant 0 : index
    %c0_40 = arith.constant 0 : index
    %c0_41 = arith.constant 0 : index
    %39 = vector.load %arg9[%c0_39, %c0_40, %c0_41] : memref<1x3x128xf32, #tpu.memory_space<vmem>>, vector<1x3x128xf32>
    %40 = vector.shape_cast %39 : vector<1x3x128xf32> to vector<3x128xf32>
    %41 = vector.shape_cast %38 : vector<3x128xf32> to vector<1x3x128xf32>
    tpu.vector_store %arg9[%c0_39, %c0_40, %c0_41], %41 {strides = array<i32>} : memref<1x3x128xf32, #tpu.memory_space<vmem>>, vector<1x3x128xf32>,
    %c0_42 = arith.constant 0 : index
    %c0_43 = arith.constant 0 : index
    %c0_44 = arith.constant 0 : index
    %42 = vector.load %arg9[%c0_42, %c0_43, %c0_44] : memref<1x3x128xf32, #tpu.memory_space<vmem>>, vector<1x3x128xf32>
    %43 = vector.shape_cast %42 : vector<1x3x128xf32> to vector<3x128xf32>
    %c0_45 = arith.constant 0 : index
    %c0_46 = arith.constant 0 : index
    %44 = vector.load %arg8[%c0_45, %c0_46] : memref<1x128xf32, #tpu.memory_space<vmem>>, vector<1x128xf32>
    %45 = vector.broadcast %44 : vector<1x128xf32> to vector<3x128xf32>
    %46 = arith.addf %43, %45 : vector<3x128xf32>
    %cst_47 = arith.constant 0.000000e+00 : f32
    %47 = vector.broadcast %cst_47 : f32 to vector<3x128xf32>
    %48 = arith.maximumf %46, %47 : vector<3x128xf32>
    %c0_48 = arith.constant 0 : index
    %c0_49 = arith.constant 0 : index
    %c0_50 = arith.constant 0 : index
    %49 = vector.load %arg9[%c0_48, %c0_49, %c0_50] : memref<1x3x128xf32, #tpu.memory_space<vmem>>, vector<1x3x128xf32>
    %50 = vector.shape_cast %49 : vector<1x3x128xf32> to vector<3x128xf32>
    %51 = vector.shape_cast %48 : vector<3x128xf32> to vector<1x3x128xf32>
    tpu.vector_store %arg9[%c0_48, %c0_49, %c0_50], %51 {strides = array<i32>} : memref<1x3x128xf32, #tpu.memory_space<vmem>>, vector<1x3x128xf32>,
    return
  }
  func.func @transform_0(%arg0: i32) -> (i32, i32, i32) {
    %c0_i32 = arith.constant 0 : i32
    %c0_i32_0 = arith.constant 0 : i32
    %c0_i32_1 = arith.constant 0 : i32
    return %arg0, %c0_i32, %c0_i32_0 : i32, i32, i32
  }
  func.func @transform_1(%arg0: i32) -> (i32, i32) {
    %c0_i32 = arith.constant 0 : i32
    %c0_i32_0 = arith.constant 0 : i32
    %c0_i32_1 = arith.constant 0 : i32
    return %c0_i32, %c0_i32_0 : i32, i32
  }
  func.func @transform_2(%arg0: i32) -> (i32, i32) {
    %c0_i32 = arith.constant 0 : i32
    %c0_i32_0 = arith.constant 0 : i32
    %c0_i32_1 = arith.constant 0 : i32
    return %c0_i32, %c0_i32_0 : i32, i32
  }
  func.func @transform_3(%arg0: i32) -> (i32, i32) {
    %c0_i32 = arith.constant 0 : i32
    %c0_i32_0 = arith.constant 0 : i32
    %c0_i32_1 = arith.constant 0 : i32
    return %c0_i32, %c0_i32_0 : i32, i32
  }
  func.func @transform_4(%arg0: i32) -> (i32, i32) {
    %c0_i32 = arith.constant 0 : i32
    %c0_i32_0 = arith.constant 0 : i32
    %c0_i32_1 = arith.constant 0 : i32
    return %c0_i32, %c0_i32_0 : i32, i32
  }
  func.func @transform_5(%arg0: i32) -> (i32, i32) {
    %c0_i32 = arith.constant 0 : i32
    %c0_i32_0 = arith.constant 0 : i32
    %c0_i32_1 = arith.constant 0 : i32
    return %c0_i32, %c0_i32_0 : i32, i32
  }
  func.func @transform_6(%arg0: i32) -> (i32, i32) {
    %c0_i32 = arith.constant 0 : i32
    %c0_i32_0 = arith.constant 0 : i32
    %c0_i32_1 = arith.constant 0 : i32
    return %c0_i32, %c0_i32_0 : i32, i32
  }
  func.func @transform_7(%arg0: i32) -> (i32, i32) {
    %c0_i32 = arith.constant 0 : i32
    %c0_i32_0 = arith.constant 0 : i32
    %c0_i32_1 = arith.constant 0 : i32
    return %c0_i32, %c0_i32_0 : i32, i32
  }
  func.func @transform_8(%arg0: i32) -> (i32, i32, i32) {
    %c0_i32 = arith.constant 0 : i32
    %c0_i32_0 = arith.constant 0 : i32
    %c0_i32_1 = arith.constant 0 : i32
    return %arg0, %c0_i32, %c0_i32_0 : i32, i32, i32
  }
}

</mosaic_0001>

<llo_original>
// kernel: subsampling_forward.1
$region0: #{subsampling_forward.1}
  #allocation0 [shape = 'u32[]', space=smem, size = 0x4, offset = 0x4, fixed_abs, tag = 'smem constant byte address 0x4 - core index']
  #allocation1 [shape = 'u32[144,128]{1,0:T(1,128)}', space=vmem, size = 0x12000, scoped, tag = 'internal scratch']
  #allocation2 [shape = 'bf16[4,256]{1,0:T(4,128)(2,1)}', space=vmem, size = 0x800, scoped, tag = 'scratch operand']
  %s0 = inlined_call_operand.vmem [shape: bf16[2,4,64], index: 0, kind: input, shape index: {}]
  %s1 = inlined_call_operand.vmem [shape: bf16[48,128], index: 1, kind: input, shape index: {}]
  %s2 = inlined_call_operand.vmem [shape: bf16[32,128], index: 2, kind: input, shape index: {}]
  %s3 = inlined_call_operand.vmem [shape: bf16[16,128], index: 3, kind: input, shape index: {}]
  %s4 = inlined_call_operand.vmem [shape: f32[1,128], index: 4, kind: input, shape index: {}]
  %s5 = inlined_call_operand.vmem [shape: bf16[256,128], index: 5, kind: input, shape index: {}]
  %s6 = inlined_call_operand.vmem [shape: bf16[128,128], index: 6, kind: input, shape index: {}]
  %s7 = inlined_call_operand.vmem [shape: f32[1,128], index: 7, kind: input, shape index: {}]
  %s8 = inlined_call_operand.vmem [shape: f32[2,3,128], index: 8, kind: output, shape index: {}]
  %s9 = sld [smem:[#allocation0]]
  $region65: #{subsampling_forward.1} parent=0
    _
  %s11 = ssub.s32 1, %s9
  %s12 = scalar_select 0, %s11, %s9
  loop: start=0, step=1, limit=4
  $region2: #{subsampling_forward.1} parent=0 // loop_pre_header
    _
  $region3: #{subsampling_forward.1} parent=0 // loop_header
    %s14 = sphi 0, %s18
    %p15 = scmp.ge.s32.totalorder %s14, 4
    %s24 = sphi 0, %s26
    %s27 = sphi 0, %s24
    %s28 = sphi 0, %s27
    %s44 = sphi 0, %s28
    %s48 = sphi 0, %s48
    %s50 = sphi 0, %s48
    %s51 = sphi 0, %s50
    %s65 = sphi 0, %s51
    %s69 = sphi 0, %s69
    %s71 = sphi 0, %s69
    %s72 = sphi 0, %s71
    %s86 = sphi 0, %s72
    %s90 = sphi 0, %s90
    %s92 = sphi 0, %s90
    %s93 = sphi 0, %s92
    %s107 = sphi 0, %s93
    %s111 = sphi 0, %s111
    %s113 = sphi 0, %s111
    %s114 = sphi 0, %s113
    %s128 = sphi 0, %s114
    %s132 = sphi 0, %s132
    %s134 = sphi 0, %s132
    %s135 = sphi 0, %s134
    %s149 = sphi 0, %s135
    %s153 = sphi 0, %s153
    %s155 = sphi 0, %s153
    %s156 = sphi 0, %s155
    %s170 = sphi 0, %s156
    %s174 = sphi 0, %s174
    %s176 = sphi 0, %s174
    %s177 = sphi 0, %s176
    %s191 = sphi 0, %s177
    %s197 = sphi 0, %s199
    %s200 = sphi 0, %s197
    %s201 = sphi 0, %s200
    %s217 = sphi 0, %s201
  $region4: #{subsampling_forward.1} parent=0 // loop_header_branch
    %17 = sbr.rel (%p15) target = $region8
  $region5: #{subsampling_forward.1} parent=0 // loop_body
    %s19 = ssub.s32 %s14, 1
    %s20 = ssub.s32 %s14, 2
    %s21 = sadd.s32 %s14, 1
    %s22 = ssub.s32 %s14, %s21
    %p23 = scmp.eq.s32.totalorder %s22, 0
    %s25 = sadd.s32 %s24, 1
    %s26 = scalar_select %p23, %s24, %s25
    %p29 = pneg %p23
    %p30 = scmp.eq.s32.totalorder %s14, 1
    %p31 = por %p29, %p30
    %p32 = scmp.ne.s32.totalorder %s24, %s27
    %p33 = scmp.eq.s32.totalorder %s14, 0
    %p34 = por %p32, %p33
    %p35 = scmp.ne.s32.totalorder %s24, %s27
    %p36 = scmp.eq.s32.totalorder %s19, 1
    %p37 = por %p35, %p36
    %p38 = scmp.ne.s32.totalorder %s27, %s28
    %p39 = scmp.eq.s32.totalorder %s19, 0
    %p40 = por %p38, %p39
    %p41 = scmp.ne.s32.totalorder %s27, %s28
    %p42 = scmp.eq.s32.totalorder %s20, 1
    %p43 = por %p41, %p42
    %p45 = scmp.ne.s32.totalorder %s28, %s44
    %p46 = scmp.eq.s32.totalorder %s20, 0
    %p47 = por %p45, %p46
    %s49 = sadd.s32 %s48, 1
    %p52 = scmp.eq.s32.totalorder %s14, 1
    %p53 = scmp.ne.s32.totalorder %s48, %s50
    %p54 = scmp.eq.s32.totalorder %s14, 0
    %p55 = por %p53, %p54
    %p56 = scmp.ne.s32.totalorder %s48, %s50
    %p57 = scmp.eq.s32.totalorder %s19, 1
    %p58 = por %p56, %p57
    %p59 = scmp.ne.s32.totalorder %s50, %s51
    %p60 = scmp.eq.s32.totalorder %s19, 0
    %p61 = por %p59, %p60
    %p62 = scmp.ne.s32.totalorder %s50, %s51
    %p63 = scmp.eq.s32.totalorder %s20, 1
    %p64 = por %p62, %p63
    %p66 = scmp.ne.s32.totalorder %s51, %s65
    %p67 = scmp.eq.s32.totalorder %s20, 0
    %p68 = por %p66, %p67
    %s70 = sadd.s32 %s69, 1
    %p73 = scmp.eq.s32.totalorder %s14, 1
    %p74 = scmp.ne.s32.totalorder %s69, %s71
    %p75 = scmp.eq.s32.totalorder %s14, 0
    %p76 = por %p74, %p75
    %p77 = scmp.ne.s32.totalorder %s69, %s71
    %p78 = scmp.eq.s32.totalorder %s19, 1
    %p79 = por %p77, %p78
    %p80 = scmp.ne.s32.totalorder %s71, %s72
    %p81 = scmp.eq.s32.totalorder %s19, 0
    %p82 = por %p80, %p81
    %p83 = scmp.ne.s32.totalorder %s71, %s72
    %p84 = scmp.eq.s32.totalorder %s20, 1
    %p85 = por %p83, %p84
    %p87 = scmp.ne.s32.totalorder %s72, %s86
    %p88 = scmp.eq.s32.totalorder %s20, 0
    %p89 = por %p87, %p88
    %s91 = sadd.s32 %s90, 1
    %p94 = scmp.eq.s32.totalorder %s14, 1
    %p95 = scmp.ne.s32.totalorder %s90, %s92
    %p96 = scmp.eq.s32.totalorder %s14, 0
    %p97 = por %p95, %p96
    %p98 = scmp.ne.s32.totalorder %s90, %s92
    %p99 = scmp.eq.s32.totalorder %s19, 1
    %p100 = por %p98, %p99
    %p101 = scmp.ne.s32.totalorder %s92, %s93
    %p102 = scmp.eq.s32.totalorder %s19, 0
    %p103 = por %p101, %p102
    %p104 = scmp.ne.s32.totalorder %s92, %s93
    %p105 = scmp.eq.s32.totalorder %s20, 1
    %p106 = por %p104, %p105
    %p108 = scmp.ne.s32.totalorder %s93, %s107
    %p109 = scmp.eq.s32.totalorder %s20, 0
    %p110 = por %p108, %p109
    %s112 = sadd.s32 %s111, 1
    %p115 = scmp.eq.s32.totalorder %s14, 1
    %p116 = scmp.ne.s32.totalorder %s111, %s113
    %p117 = scmp.eq.s32.totalorder %s14, 0
    %p118 = por %p116, %p117
    %p119 = scmp.ne.s32.totalorder %s111, %s113
    %p120 = scmp.eq.s32.totalorder %s19, 1
    %p121 = por %p119, %p120
    %p122 = scmp.ne.s32.totalorder %s113, %s114
    %p123 = scmp.eq.s32.totalorder %s19, 0
    %p124 = por %p122, %p123
    %p125 = scmp.ne.s32.totalorder %s113, %s114
    %p126 = scmp.eq.s32.totalorder %s20, 1
    %p127 = por %p125, %p126
    %p129 = scmp.ne.s32.totalorder %s114, %s128
    %p130 = scmp.eq.s32.totalorder %s20, 0
    %p131 = por %p129, %p130
    %s133 = sadd.s32 %s132, 1
    %p136 = scmp.eq.s32.totalorder %s14, 1
    %p137 = scmp.ne.s32.totalorder %s132, %s134
    %p138 = scmp.eq.s32.totalorder %s14, 0
    %p139 = por %p137, %p138
    %p140 = scmp.ne.s32.totalorder %s132, %s134
    %p141 = scmp.eq.s32.totalorder %s19, 1
    %p142 = por %p140, %p141
    %p143 = scmp.ne.s32.totalorder %s134, %s135
    %p144 = scmp.eq.s32.totalorder %s19, 0
    %p145 = por %p143, %p144
    %p146 = scmp.ne.s32.totalorder %s134, %s135
    %p147 = scmp.eq.s32.totalorder %s20, 1
    %p148 = por %p146, %p147
    %p150 = scmp.ne.s32.totalorder %s135, %s149
    %p151 = scmp.eq.s32.totalorder %s20, 0
    %p152 = por %p150, %p151
    %s154 = sadd.s32 %s153, 1
    %p157 = scmp.eq.s32.totalorder %s14, 1
    %p158 = scmp.ne.s32.totalorder %s153, %s155
    %p159 = scmp.eq.s32.totalorder %s14, 0
    %p160 = por %p158, %p159
    %p161 = scmp.ne.s32.totalorder %s153, %s155
    %p162 = scmp.eq.s32.totalorder %s19, 1
    %p163 = por %p161, %p162
    %p164 = scmp.ne.s32.totalorder %s155, %s156
    %p165 = scmp.eq.s32.totalorder %s19, 0
    %p166 = por %p164, %p165
    %p167 = scmp.ne.s32.totalorder %s155, %s156
    %p168 = scmp.eq.s32.totalorder %s20, 1
    %p169 = por %p167, %p168
    %p171 = scmp.ne.s32.totalorder %s156, %s170
    %p172 = scmp.eq.s32.totalorder %s20, 0
    %p173 = por %p171, %p172
    %s175 = sadd.s32 %s174, 1
    %p178 = scmp.eq.s32.totalorder %s14, 1
    %p179 = scmp.ne.s32.totalorder %s174, %s176
    %p180 = scmp.eq.s32.totalorder %s14, 0
    %p181 = por %p179, %p180
    %p182 = scmp.ne.s32.totalorder %s174, %s176
    %p183 = scmp.eq.s32.totalorder %s19, 1
    %p184 = por %p182, %p183
    %p185 = scmp.ne.s32.totalorder %s176, %s177
    %p186 = scmp.eq.s32.totalorder %s19, 0
    %p187 = por %p185, %p186
    %p188 = scmp.ne.s32.totalorder %s176, %s177
    %p189 = scmp.eq.s32.totalorder %s20, 1
    %p190 = por %p188, %p189
    %p192 = scmp.ne.s32.totalorder %s177, %s191
    %p193 = scmp.eq.s32.totalorder %s20, 0
    %p194 = por %p192, %p193
    %s195 = ssub.s32 %s14, %s21
    %p196 = scmp.eq.s32.totalorder %s195, 0
    %s198 = sadd.s32 %s197, 1
    %s199 = scalar_select %p196, %s197, %s198
    %p202 = pneg %p196
    %p203 = scmp.eq.s32.totalorder %s14, 1
    %p204 = por %p202, %p203
    %p205 = scmp.ne.s32.totalorder %s197, %s200
    %p206 = scmp.eq.s32.totalorder %s14, 0
    %p207 = por %p205, %p206
    %p208 = scmp.ne.s32.totalorder %s197, %s200
    %p209 = scmp.eq.s32.totalorder %s19, 1
    %p210 = por %p208, %p209
    %p211 = scmp.ne.s32.totalorder %s200, %s201
    %p212 = scmp.eq.s32.totalorder %s19, 0
    %p213 = por %p211, %p212
    %p214 = scmp.ne.s32.totalorder %s200, %s201
    %p215 = scmp.eq.s32.totalorder %s20, 1
    %p216 = por %p214, %p215
    %p218 = scmp.ne.s32.totalorder %s201, %s217
    %p219 = scmp.eq.s32.totalorder %s20, 0
    %p220 = por %p218, %p219
    %p221 = scmp.le.s32.totalorder 1, %s14
    %p222 = scmp.lt.s32.totalorder %s14, 3
    %p223 = pnand %p221, %p222
    %p224 = pneg %p223
    // Predicated region
    $region9: #{subsampling_forward.1} parent=5 // pred_check
      _
    $region10: #{subsampling_forward.1} parent=5 // pred_check_branch
      %226 = sbr.rel (%p223) target = $region12
    $region11: #{subsampling_forward.1} parent=5 // pred_region
      %s227 = ssub.s32 %s14, 1
      // Predicated region
      $region13: #{subsampling_forward.1} parent=11 // pred_check
        %p228 = pneg %p61
      $region14: #{subsampling_forward.1} parent=11 // pred_check_branch
        %230 = sbr.rel (%p228) target = $region16
      $region15: #{subsampling_forward.1} parent=11 // pred_region
        _
      $region16: #{subsampling_forward.1} parent=11 // pred_fallthru
        _
      // Predicated region
      $region17: #{subsampling_forward.1} parent=11 // pred_check
        %p231 = pneg %p82
      $region18: #{subsampling_forward.1} parent=11 // pred_check_branch
        %233 = sbr.rel (%p231) target = $region20
      $region19: #{subsampling_forward.1} parent=11 // pred_region
        _
      $region20: #{subsampling_forward.1} parent=11 // pred_fallthru
        _
      // Predicated region
      $region21: #{subsampling_forward.1} parent=11 // pred_check
        %p234 = pneg %p103
      $region22: #{subsampling_forward.1} parent=11 // pred_check_branch
        %236 = sbr.rel (%p234) target = $region24
      $region23: #{subsampling_forward.1} parent=11 // pred_region
        _
      $region24: #{subsampling_forward.1} parent=11 // pred_fallthru
        _
      // Predicated region
      $region25: #{subsampling_forward.1} parent=11 // pred_check
        %p237 = pneg %p124
      $region26: #{subsampling_forward.1} parent=11 // pred_check_branch
        %239 = sbr.rel (%p237) target = $region28
      $region27: #{subsampling_forward.1} parent=11 // pred_region
        _
      $region28: #{subsampling_forward.1} parent=11 // pred_fallthru
        _
      // Predicated region
      $region29: #{subsampling_forward.1} parent=11 // pred_check
        %p240 = pneg %p145
      $region30: #{subsampling_forward.1} parent=11 // pred_check_branch
        %242 = sbr.rel (%p240) target = $region32
      $region31: #{subsampling_forward.1} parent=11 // pred_region
        _
      $region32: #{subsampling_forward.1} parent=11 // pred_fallthru
        _
      // Predicated region
      $region33: #{subsampling_forward.1} parent=11 // pred_check
        %p243 = pneg %p166
      $region34: #{subsampling_forward.1} parent=11 // pred_check_branch
        %245 = sbr.rel (%p243) target = $region36
      $region35: #{subsampling_forward.1} parent=11 // pred_region
        _
      $region36: #{subsampling_forward.1} parent=11 // pred_fallthru
        _
      // Predicated region
      $region37: #{subsampling_forward.1} parent=11 // pred_check
        %p246 = pneg %p187
      $region38: #{subsampling_forward.1} parent=11 // pred_check_branch
        %248 = sbr.rel (%p246) target = $region40
      $region39: #{subsampling_forward.1} parent=11 // pred_region
        _
      $region40: #{subsampling_forward.1} parent=11 // pred_fallthru
        _
    $region12: #{subsampling_forward.1} parent=5 // pred_fallthru
      _
    %p249 = scmp.lt.s32.totalorder %s14, 2
    // Predicated region
    $region41: #{subsampling_forward.1} parent=5 // pred_check
      %p250 = pneg %p249
    $region42: #{subsampling_forward.1} parent=5 // pred_check_branch
      %252 = sbr.rel (%p250) target = $region44
    $region43: #{subsampling_forward.1} parent=5 // pred_region
      // Predicated region
      $region45: #{subsampling_forward.1} parent=43 // pred_check
        %p253 = pneg %p34
      $region46: #{subsampling_forward.1} parent=43 // pred_check_branch
        %255 = sbr.rel (%p253) target = $region48
      $region47: #{subsampling_forward.1} parent=43 // pred_region
        %p256 = scmp.lt.s32.totalorder %s14, 1
        %s257 = scalar_select %p256, %s14, 1
        %s258 = smul.addr %s257, 2
        %s259 = scalar_lea.vmem %s0, %s258
      $region48: #{subsampling_forward.1} parent=43 // pred_fallthru
        _
    $region44: #{subsampling_forward.1} parent=5 // pred_fallthru
      _
    %p260 = scmp.le.s32.totalorder 1, %s14
    %p261 = scmp.lt.s32.totalorder %s14, 3
    %p262 = pnand %p260, %p261
    %p263 = pneg %p262
    // Predicated region
    $region49: #{subsampling_forward.1} parent=5 // pred_check
      _
    $region50: #{subsampling_forward.1} parent=5 // pred_check_branch
      %265 = sbr.rel (%p262) target = $region52
    $region51: #{subsampling_forward.1} parent=5 // pred_region
      %s266 = ssub.s32 %s14, 1
      %p267 = scmp.lt.s32.totalorder %s19, 1
      %s268 = scalar_select %p267, %s19, 1
      %s269 = smul.addr %s268, 2
      %s270 = scalar_lea.vmem %s0, %s269
      %p271 = pneg %p40
      %p272 = pneg %p37
      %p273 = pneg %p61
      %p274 = pneg %p58
      %p275 = pneg %p82
      %p276 = pneg %p79
      %p277 = pneg %p103
      %p278 = pneg %p100
      %p279 = pneg %p124
      %p280 = pneg %p121
      %p281 = pneg %p145
      %p282 = pneg %p142
      %p283 = pneg %p166
      %p284 = pneg %p163
      %p285 = pneg %p187
      %p286 = pneg %p184
      %p287 = pneg %p213
      %p288 = pneg %p210
      %p289 = scmp.lt.s32.totalorder %s19, 1
      %s290 = scalar_select %p289, %s19, 1
      %s291 = smul.addr %s290, 4
      %s292 = scalar_lea.vmem %s8, %s291
      %p293 = scmp.lt.s32.totalorder %s19, 1
      %s294 = scalar_select %p293, %s19, 1
      %s295 = smul.addr %s294, 2
      %s296 = scalar_lea.vmem %s0, %s295
      %p297 = scmp.lt.s32.totalorder %s19, 1
      %s298 = scalar_select %p297, %s19, 1
      %s299 = smul.addr %s298, 4
      %s300 = scalar_lea.vmem %s8, %s299
      %v302 = vld [vmem:[%s296] sm:$0x3]
      %v303 = vld [vmem:[%s1] sm:$0xf]
      %v304 = vld [vmem:[%s1 + $0x4] sm:$0xf]
      %v305 = vld [vmem:[%s1 + $0x8] sm:$0xf]
      %v306 = vld [vmem:[%s1 + $0xc] sm:$0xf]
      %v307 = vld [vmem:[%s1 + $0x10] sm:$0xf]
      %v308 = vld [vmem:[%s1 + $0x14] sm:$0xf]
      %v309 = vld [vmem:[%s4] sm:$0x1]
      %v311 = vlaneseq
      %v312 = vshrl.u32 %v311, 7
      %v313 = vsub.s32 0, %v312
      %v314 = vrot.slane %v309, %v313
      %v322 = vunpack.c.l.b16 %v303
      %v323 = vunpack.c.l.b16 %v304
      %v324 = vunpack.c.l.b16 %v305
      %v325 = vunpack.c.l.b16 %v306
      %v326 = vunpack.c.l.b16 %v307
      %v327 = vunpack.c.l.b16 %v308
      %v328 = vpack.c.b16 %v323, %v322
      %v329 = vpack.c.b16 %v325, %v324
      %v330 = vpack.c.b16 %v327, %v326
      %vm334 = vcmask 392192
      %v336 = vsel %vm334, %v302, 0
      %338 = vmatprep.subr.bf16.mxu0 0
      %339 = vmatpush1.bf16.msra.mxu0 %v328
      %340 = vmatprep.subr.bf16.mxu0 0
      %341 = vmatpush1.bf16.msra.mxu0 %v329
      %342 = vmatprep.subr.bf16.mxu0 0
      %343 = vmatpush1.bf16.msra.mxu0 %v330
      %344 = vmatprep.subr.bf16.mxu0 0
      %345 = vmatpush1.bf16.msra.mxu0 0
      %346 = vmatprep.subr.bf16.mxu0 0
      %347 = vmatpush1.bf16.msra.mxu0 0
      %348 = vmatprep.subr.bf16.mxu0 0
      %349 = vmatpush1.bf16.msra.mxu0 0
      %350 = vmatprep.subr.bf16.mxu0 0
      %351 = vmatpush1.bf16.msra.mxu0 0
      %352 = vmatprep.subr.bf16.mxu0 0
      %353 = vmatpush1.bf16.msra.mxu0 0
      %354 = vmatprep.subr.bf16.mxu0 0
      %355 = vmatpush1.bf16.msra.mxu0 0
      %356 = vmatprep.subr.bf16.mxu0 0
      %357 = vmatpush1.bf16.msra.mxu0 0
      %358 = vmatprep.subr.bf16.mxu0 0
      %359 = vmatpush1.bf16.msra.mxu0 0
      %360 = vmatprep.subr.bf16.mxu0 0
      %361 = vmatpush1.bf16.msra.mxu0 0
      %362 = vmatprep.subr.bf16.mxu0 0
      %363 = vmatpush1.bf16.msra.mxu0 0
      %364 = vmatprep.subr.bf16.mxu0 0
      %365 = vmatpush1.bf16.msra.mxu0 0
      %366 = vmatprep.subr.bf16.mxu0 0
      %367 = vmatpush1.bf16.msra.mxu0 0
      %368 = vmatprep.subr.bf16.mxu0 0
      %369 = vmatpush1.bf16.msra.mxu0 0
      %370 = vmatprep.mubr.bf16.mxu0 0
      %371 = vmatmul.mubr.bf16.gmra.mrb[0].mxu0 %v336
      %v372 = vpop.f32.mrb[0].mxu0
      %v373 = vadd.f32 %v314, %v372
      %v374 = vpop.f32.mrb[0].mxu0
      %v375 = vpop.f32.mrb[0].mxu0
      %v376 = vpop.f32.mrb[0].mxu0
      %377 = vdwg.mxu0
      %v378 = vmax.f32 %v373, 0.0
      %v379 = vpack.c.bf16 %v378, %v378
      %380 = vst [vmem:[#allocation2] sm:$0x3] %v379
      %v381 = vld [vmem:[%s296] sm:$0x3]
      %v382 = vld [vmem:[%s2] sm:$0xf]
      %v383 = vld [vmem:[%s2 + $0x4] sm:$0xf]
      %v384 = vld [vmem:[%s2 + $0x8] sm:$0xf]
      %v385 = vld [vmem:[%s2 + $0xc] sm:$0xf]
      %v386 = vld [vmem:[%s3] sm:$0xf]
      %v387 = vld [vmem:[%s3 + $0x4] sm:$0xf]
      %v390 = vunpack.c.l.s4 1983009808
      %v391 = vunpack.c.0.s8 %v390
      %v392 = vlaneseq
      %v393 = vshrl.u32 %v392, 7
      %v394 = vsub.s32 %v391, %v393
      %v395 = vrot.slane %v381, %v394
      %v397 = vshrl.u32 %v395, 16
      %v399 = vshll.u32 %v395, 16
      %v401 = vrot.slane %v399, 1
      %v402 = vor.u32 %v397, %v401
      %v405 = vunpack.c.l.b16 %v386
      %v406 = vunpack.c.l.b16 %v387
      %v407 = vpack.c.b16 %v406, %v405
      %vm409 = vcmask 130048
      %v411 = vsel %vm409, %v402, 0
      %413 = vmatprep.subr.bf16.mxu0 0
      %414 = vmatpush1.bf16.msra.mxu0 %v407
      %415 = vmatprep.subr.bf16.mxu0 0
      %416 = vmatpush1.bf16.msra.mxu0 0
      %417 = vmatprep.subr.bf16.mxu0 0
      %418 = vmatpush1.bf16.msra.mxu0 0
      %419 = vmatprep.subr.bf16.mxu0 0
      %420 = vmatpush1.bf16.msra.mxu0 0
      %421 = vmatprep.subr.bf16.mxu0 0
      %422 = vmatpush1.bf16.msra.mxu0 0
      %423 = vmatprep.subr.bf16.mxu0 0
      %424 = vmatpush1.bf16.msra.mxu0 0
      %425 = vmatprep.subr.bf16.mxu0 0
      %426 = vmatpush1.bf16.msra.mxu0 0
      %427 = vmatprep.subr.bf16.mxu0 0
      %428 = vmatpush1.bf16.msra.mxu0 0
      %429 = vmatprep.subr.bf16.mxu0 0
      %430 = vmatpush1.bf16.msra.mxu0 0
      %431 = vmatprep.subr.bf16.mxu0 0
      %432 = vmatpush1.bf16.msra.mxu0 0
      %433 = vmatprep.subr.bf16.mxu0 0
      %434 = vmatpush1.bf16.msra.mxu0 0
      %435 = vmatprep.subr.bf16.mxu0 0
      %436 = vmatpush1.bf16.msra.mxu0 0
      %437 = vmatprep.subr.bf16.mxu0 0
      %438 = vmatpush1.bf16.msra.mxu0 0
      %439 = vmatprep.subr.bf16.mxu0 0
      %440 = vmatpush1.bf16.msra.mxu0 0
      %441 = vmatprep.subr.bf16.mxu0 0
      %442 = vmatpush1.bf16.msra.mxu0 0
      %443 = vmatprep.subr.bf16.mxu0 0
      %444 = vmatpush1.bf16.msra.mxu0 0
      %445 = vmatprep.mubr.bf16.mxu0 0
      %446 = vmatmul.mubr.bf16.gmra.mrb[0].mxu0 %v411
      %v447 = vpop.f32.mrb[0].mxu0
      %v448 = vadd.f32 0.0, %v447
      %v449 = vpop.f32.mrb[0].mxu0
      %v450 = vpop.f32.mrb[0].mxu0
      %v451 = vpop.f32.mrb[0].mxu0
      %452 = vdwg.mxu0
      %453 = vrot.lane.b32.xlu0 %v395, 96
      %v454 = vpop.permute.xlu0 %453
      %v459 = vunpack.c.l.b16 %v382
      %v460 = vunpack.c.l.b16 %v383
      %v461 = vunpack.c.l.b16 %v384
      %v462 = vunpack.c.l.b16 %v385
      %v463 = vpack.c.b16 %v460, %v459
      %v464 = vpack.c.b16 %v462, %v461
      %vm467 = vcmask 261120
      %v469 = vsel %vm467, %v454, 0
      %471 = vmatprep.subr.bf16.mxu0 0
      %472 = vmatpush1.bf16.msra.mxu0 %v463
      %473 = vmatprep.subr.bf16.mxu0 0
      %474 = vmatpush1.bf16.msra.mxu0 %v464
      %475 = vmatprep.subr.bf16.mxu0 0
      %476 = vmatpush1.bf16.msra.mxu0 0
      %477 = vmatprep.subr.bf16.mxu0 0
      %478 = vmatpush1.bf16.msra.mxu0 0
      %479 = vmatprep.subr.bf16.mxu0 0
      %480 = vmatpush1.bf16.msra.mxu0 0
      %481 = vmatprep.subr.bf16.mxu0 0
      %482 = vmatpush1.bf16.msra.mxu0 0
      %483 = vmatprep.subr.bf16.mxu0 0
      %484 = vmatpush1.bf16.msra.mxu0 0
      %485 = vmatprep.subr.bf16.mxu0 0
      %486 = vmatpush1.bf16.msra.mxu0 0
      %487 = vmatprep.subr.bf16.mxu0 0
      %488 = vmatpush1.bf16.msra.mxu0 0
      %489 = vmatprep.subr.bf16.mxu0 0
      %490 = vmatpush1.bf16.msra.mxu0 0
      %491 = vmatprep.subr.bf16.mxu0 0
      %492 = vmatpush1.bf16.msra.mxu0 0
      %493 = vmatprep.subr.bf16.mxu0 0
      %494 = vmatpush1.bf16.msra.mxu0 0
      %495 = vmatprep.subr.bf16.mxu0 0
      %496 = vmatpush1.bf16.msra.mxu0 0
      %497 = vmatprep.subr.bf16.mxu0 0
      %498 = vmatpush1.bf16.msra.mxu0 0
      %499 = vmatprep.subr.bf16.mxu0 0
      %500 = vmatpush1.bf16.msra.mxu0 0
      %501 = vmatprep.subr.bf16.mxu0 0
      %502 = vmatpush1.bf16.msra.mxu0 0
      %503 = vmatprep.mubr.bf16.mxu0 0
      %504 = vmatmul.mubr.bf16.gmra.mrb[0].mxu0 %v469
      %v505 = vpop.f32.mrb[0].mxu0
      %v506 = vadd.f32 %v448, %v505
      %v507 = vpop.f32.mrb[0].mxu0
      %v508 = vpop.f32.mrb[0].mxu0
      %v509 = vpop.f32.mrb[0].mxu0
      %510 = vdwg.mxu0
      %v511 = vld [vmem:[%s4] sm:$0x1]
      %v513 = vlaneseq
      %v514 = vshrl.u32 %v513, 7
      %v515 = vsub.s32 0, %v514
      %v516 = vrot.slane %v511, %v515
      %v518 = vadd.f32 %v506, %v516
      %v519 = vmax.f32 %v518, 0.0
      %v520 = vpack.c.bf16 %v519, %v519
      %vm521 = vcmask 1041408
      %vm522 = vsmask.f32 1280
      %vm523 = vmand %vm521, %vm522
      %v524 = vld [vmem:[#allocation2 + $0x2] sm:$0x3]
      %v525 = vsel %vm523, %v520, %v524
      %526 = vst [vmem:[#allocation2 + $0x2] sm:$0x3] %v525
      %v527 = vld [vmem:[#allocation2] sm:$0xf]
      %v528 = vld [vmem:[%s5] sm:$0xf]
      %v529 = vld [vmem:[%s5 + $0x4] sm:$0xf]
      %v530 = vld [vmem:[%s5 + $0x8] sm:$0xf]
      %v531 = vld [vmem:[%s5 + $0xc] sm:$0xf]
      %v532 = vld [vmem:[%s5 + $0x10] sm:$0xf]
      %v533 = vld [vmem:[%s5 + $0x14] sm:$0xf]
      %v534 = vld [vmem:[%s5 + $0x18] sm:$0xf]
      %v535 = vld [vmem:[%s5 + $0x1c] sm:$0xf]
      %v536 = vld [vmem:[%s5 + $0x20] sm:$0xf]
      %v537 = vld [vmem:[%s5 + $0x24] sm:$0xf]
      %v538 = vld [vmem:[%s5 + $0x28] sm:$0xf]
      %v539 = vld [vmem:[%s5 + $0x2c] sm:$0xf]
      %v540 = vld [vmem:[%s5 + $0x30] sm:$0xf]
      %v541 = vld [vmem:[%s5 + $0x34] sm:$0xf]
      %v542 = vld [vmem:[%s5 + $0x38] sm:$0xf]
      %v543 = vld [vmem:[%s5 + $0x3c] sm:$0xf]
      %v544 = vld [vmem:[%s5 + $0x40] sm:$0xf]
      %v545 = vld [vmem:[%s5 + $0x44] sm:$0xf]
      %v546 = vld [vmem:[%s5 + $0x48] sm:$0xf]
      %v547 = vld [vmem:[%s5 + $0x4c] sm:$0xf]
      %v548 = vld [vmem:[%s5 + $0x50] sm:$0xf]
      %v549 = vld [vmem:[%s5 + $0x54] sm:$0xf]
      %v550 = vld [vmem:[%s5 + $0x58] sm:$0xf]
      %v551 = vld [vmem:[%s5 + $0x5c] sm:$0xf]
      %v552 = vld [vmem:[%s5 + $0x60] sm:$0xf]
      %v553 = vld [vmem:[%s5 + $0x64] sm:$0xf]
      %v554 = vld [vmem:[%s5 + $0x68] sm:$0xf]
      %v555 = vld [vmem:[%s5 + $0x6c] sm:$0xf]
      %v556 = vld [vmem:[%s5 + $0x70] sm:$0xf]
      %v557 = vld [vmem:[%s5 + $0x74] sm:$0xf]
      %v558 = vld [vmem:[%s5 + $0x78] sm:$0xf]
      %v559 = vld [vmem:[%s5 + $0x7c] sm:$0xf]
      %v562 = vunpack.c.l.s4 1983009808
      %v563 = vunpack.c.0.s8 %v562
      %v564 = vlaneseq
      %v565 = vshrl.u32 %v564, 7
      %v566 = vsub.s32 %v563, %v565
      %v567 = vrot.slane %v527, %v566
      %v568 = vcombine.high %v567, %v567
      %v603 = vunpack.c.l.b16 %v528
      %v604 = vunpack.c.l.b16 %v529
      %v605 = vunpack.c.l.b16 %v530
      %v606 = vunpack.c.l.b16 %v531
      %v607 = vunpack.c.l.b16 %v532
      %v608 = vunpack.c.l.b16 %v533
      %v609 = vunpack.c.l.b16 %v534
      %v610 = vunpack.c.l.b16 %v535
      %v611 = vunpack.c.l.b16 %v536
      %v612 = vunpack.c.l.b16 %v537
      %v613 = vunpack.c.l.b16 %v538
      %v614 = vunpack.c.l.b16 %v539
      %v615 = vunpack.c.l.b16 %v540
      %v616 = vunpack.c.l.b16 %v541
      %v617 = vunpack.c.l.b16 %v542
      %v618 = vunpack.c.l.b16 %v543
      %v619 = vunpack.c.l.b16 %v544
      %v620 = vunpack.c.l.b16 %v545
      %v621 = vunpack.c.l.b16 %v546
      %v622 = vunpack.c.l.b16 %v547
      %v623 = vunpack.c.l.b16 %v548
      %v624 = vunpack.c.l.b16 %v549
      %v625 = vunpack.c.l.b16 %v550
      %v626 = vunpack.c.l.b16 %v551
      %v627 = vunpack.c.l.b16 %v552
      %v628 = vunpack.c.l.b16 %v553
      %v629 = vunpack.c.l.b16 %v554
      %v630 = vunpack.c.l.b16 %v555
      %v631 = vunpack.c.l.b16 %v556
      %v632 = vunpack.c.l.b16 %v557
      %v633 = vunpack.c.l.b16 %v558
      %v634 = vunpack.c.l.b16 %v559
      %v635 = vpack.c.b16 %v604, %v603
      %v636 = vpack.c.b16 %v606, %v605
      %v637 = vpack.c.b16 %v608, %v607
      %v638 = vpack.c.b16 %v610, %v609
      %v639 = vpack.c.b16 %v612, %v611
      %v640 = vpack.c.b16 %v614, %v613
      %v641 = vpack.c.b16 %v616, %v615
      %v642 = vpack.c.b16 %v618, %v617
      %v643 = vpack.c.b16 %v620, %v619
      %v644 = vpack.c.b16 %v622, %v621
      %v645 = vpack.c.b16 %v624, %v623
      %v646 = vpack.c.b16 %v626, %v625
      %v647 = vpack.c.b16 %v628, %v627
      %v648 = vpack.c.b16 %v630, %v629
      %v649 = vpack.c.b16 %v632, %v631
      %v650 = vpack.c.b16 %v634, %v633
      %667 = vmatprep.subr.bf16.mxu0 0
      %668 = vmatpush1.bf16.msra.mxu0 %v635
      %669 = vmatprep.subr.bf16.mxu0 0
      %670 = vmatpush1.bf16.msra.mxu0 %v636
      %671 = vmatprep.subr.bf16.mxu0 0
      %672 = vmatpush1.bf16.msra.mxu0 %v637
      %673 = vmatprep.subr.bf16.mxu0 0
      %674 = vmatpush1.bf16.msra.mxu0 %v638
      %675 = vmatprep.subr.bf16.mxu0 0
      %676 = vmatpush1.bf16.msra.mxu0 %v639
      %677 = vmatprep.subr.bf16.mxu0 0
      %678 = vmatpush1.bf16.msra.mxu0 %v640
      %679 = vmatprep.subr.bf16.mxu0 0
      %680 = vmatpush1.bf16.msra.mxu0 %v641
      %681 = vmatprep.subr.bf16.mxu0 0
      %682 = vmatpush1.bf16.msra.mxu0 %v642
      %683 = vmatprep.subr.bf16.mxu0 0
      %684 = vmatpush1.bf16.msra.mxu0 %v643
      %685 = vmatprep.subr.bf16.mxu0 0
      %686 = vmatpush1.bf16.msra.mxu0 %v644
      %687 = vmatprep.subr.bf16.mxu0 0
      %688 = vmatpush1.bf16.msra.mxu0 %v645
      %689 = vmatprep.subr.bf16.mxu0 0
      %690 = vmatpush1.bf16.msra.mxu0 %v646
      %691 = vmatprep.subr.bf16.mxu0 0
      %692 = vmatpush1.bf16.msra.mxu0 %v647
      %693 = vmatprep.subr.bf16.mxu0 0
      %694 = vmatpush1.bf16.msra.mxu0 %v648
      %695 = vmatprep.subr.bf16.mxu0 0
      %696 = vmatpush1.bf16.msra.mxu0 %v649
      %697 = vmatprep.subr.bf16.mxu0 0
      %698 = vmatpush1.bf16.msra.mxu0 %v650
      %699 = vmatprep.mubr.bf16.mxu0 %v568
      %700 = vmatmul.mubr.bf16.gmra.mrb[0].mxu0 %v567
      %v701 = vpop.f32.mrb[0].mxu0
      %v702 = vadd.f32 0.0, %v701
      %v703 = vpop.f32.mrb[0].mxu0
      %v704 = vpop.f32.mrb[0].mxu0
      %v705 = vpop.f32.mrb[0].mxu0
      %706 = vdwg.mxu0
      %707 = vst [vmem:[%s300] sm:$0x7] %v702
      %v708 = vld [vmem:[%s300] sm:$0x7]
      %v709 = vld [vmem:[#allocation2] sm:$0x3]
      %v710 = vld [vmem:[%s6] sm:$0xf]
      %v711 = vld [vmem:[%s6 + $0x4] sm:$0xf]
      %v712 = vld [vmem:[%s6 + $0x8] sm:$0xf]
      %v713 = vld [vmem:[%s6 + $0xc] sm:$0xf]
      %v714 = vld [vmem:[%s6 + $0x10] sm:$0xf]
      %v715 = vld [vmem:[%s6 + $0x14] sm:$0xf]
      %v716 = vld [vmem:[%s6 + $0x18] sm:$0xf]
      %v717 = vld [vmem:[%s6 + $0x1c] sm:$0xf]
      %v718 = vld [vmem:[%s6 + $0x20] sm:$0xf]
      %v719 = vld [vmem:[%s6 + $0x24] sm:$0xf]
      %v720 = vld [vmem:[%s6 + $0x28] sm:$0xf]
      %v721 = vld [vmem:[%s6 + $0x2c] sm:$0xf]
      %v722 = vld [vmem:[%s6 + $0x30] sm:$0xf]
      %v723 = vld [vmem:[%s6 + $0x34] sm:$0xf]
      %v724 = vld [vmem:[%s6 + $0x38] sm:$0xf]
      %v725 = vld [vmem:[%s6 + $0x3c] sm:$0xf]
      %v728 = vunpack.c.l.s4 1983009808
      %v729 = vunpack.c.0.s8 %v728
      %v730 = vlaneseq
      %v731 = vshrl.u32 %v730, 7
      %v732 = vsub.s32 %v729, %v731
      %v733 = vrot.slane %v709, %v732
      %v735 = vshrl.u32 %v733, 16
      %v737 = vshll.u32 %v733, 16
      %v739 = vrot.slane %v737, 1
      %v740 = vor.u32 %v735, %v739
      %v758 = vunpack.c.l.b16 %v710
      %v759 = vunpack.c.l.b16 %v711
      %v760 = vunpack.c.l.b16 %v712
      %v761 = vunpack.c.l.b16 %v713
      %v762 = vunpack.c.l.b16 %v714
      %v763 = vunpack.c.l.b16 %v715
      %v764 = vunpack.c.l.b16 %v716
      %v765 = vunpack.c.l.b16 %v717
      %v766 = vunpack.c.l.b16 %v718
      %v767 = vunpack.c.l.b16 %v719
      %v768 = vunpack.c.l.b16 %v720
      %v769 = vunpack.c.l.b16 %v721
      %v770 = vunpack.c.l.b16 %v722
      %v771 = vunpack.c.l.b16 %v723
      %v772 = vunpack.c.l.b16 %v724
      %v773 = vunpack.c.l.b16 %v725
      %v774 = vpack.c.b16 %v759, %v758
      %v775 = vpack.c.b16 %v761, %v760
      %v776 = vpack.c.b16 %v763, %v762
      %v777 = vpack.c.b16 %v765, %v764
      %v778 = vpack.c.b16 %v767, %v766
      %v779 = vpack.c.b16 %v769, %v768
      %v780 = vpack.c.b16 %v771, %v770
      %v781 = vpack.c.b16 %v773, %v772
      %790 = vmatprep.subr.bf16.mxu0 0
      %791 = vmatpush1.bf16.msra.mxu0 %v774
      %792 = vmatprep.subr.bf16.mxu0 0
      %793 = vmatpush1.bf16.msra.mxu0 %v775
      %794 = vmatprep.subr.bf16.mxu0 0
      %795 = vmatpush1.bf16.msra.mxu0 %v776
      %796 = vmatprep.subr.bf16.mxu0 0
      %797 = vmatpush1.bf16.msra.mxu0 %v777
      %798 = vmatprep.subr.bf16.mxu0 0
      %799 = vmatpush1.bf16.msra.mxu0 %v778
      %800 = vmatprep.subr.bf16.mxu0 0
      %801 = vmatpush1.bf16.msra.mxu0 %v779
      %802 = vmatprep.subr.bf16.mxu0 0
      %803 = vmatpush1.bf16.msra.mxu0 %v780
      %804 = vmatprep.subr.bf16.mxu0 0
      %805 = vmatpush1.bf16.msra.mxu0 %v781
      %806 = vmatprep.subr.bf16.mxu0 0
      %807 = vmatpush1.bf16.msra.mxu0 0
      %808 = vmatprep.subr.bf16.mxu0 0
      %809 = vmatpush1.bf16.msra.mxu0 0
      %810 = vmatprep.subr.bf16.mxu0 0
      %811 = vmatpush1.bf16.msra.mxu0 0
      %812 = vmatprep.subr.bf16.mxu0 0
      %813 = vmatpush1.bf16.msra.mxu0 0
      %814 = vmatprep.subr.bf16.mxu0 0
      %815 = vmatpush1.bf16.msra.mxu0 0
      %816 = vmatprep.subr.bf16.mxu0 0
      %817 = vmatpush1.bf16.msra.mxu0 0
      %818 = vmatprep.subr.bf16.mxu0 0
      %819 = vmatpush1.bf16.msra.mxu0 0
      %820 = vmatprep.subr.bf16.mxu0 0
      %821 = vmatpush1.bf16.msra.mxu0 0
      %822 = vmatprep.mubr.bf16.mxu0 0
      %823 = vmatmul.mubr.bf16.gmra.mrb[0].mxu0 %v740
      %v824 = vpop.f32.mrb[0].mxu0
      %v825 = vadd.f32 0.0, %v824
      %v826 = vpop.f32.mrb[0].mxu0
      %v827 = vpop.f32.mrb[0].mxu0
      %v828 = vpop.f32.mrb[0].mxu0
      %829 = vdwg.mxu0
      %v830 = vadd.f32 %v708, %v825
      %831 = vst [vmem:[%s300] sm:$0x7] %v830
      %v832 = vld [vmem:[%s300] sm:$0x7]
      %v833 = vld [vmem:[%s7] sm:$0x1]
      %v835 = vlaneseq
      %v836 = vshrl.u32 %v835, 7
      %v837 = vsub.s32 0, %v836
      %v838 = vrot.slane %v833, %v837
      %v840 = vadd.f32 %v832, %v838
      %v841 = vmax.f32 %v840, 0.0
      %842 = vst [vmem:[%s300] sm:$0x7] %v841
      %p843 = scmp.lt.s32.totalorder %s19, 1
      %s844 = scalar_select %p843, %s19, 1
      %s845 = smul.addr %s844, 4
      %s846 = scalar_lea.vmem %s8, %s845
      // Predicated region
      $region53: #{subsampling_forward.1} parent=51 // pred_check
        %p847 = pneg %p210
      $region54: #{subsampling_forward.1} parent=51 // pred_check_branch
        %849 = sbr.rel (%p847) target = $region56
      $region55: #{subsampling_forward.1} parent=51 // pred_region
        _
      $region56: #{subsampling_forward.1} parent=51 // pred_fallthru
        _
    $region52: #{subsampling_forward.1} parent=5 // pred_fallthru
      _
    %p850 = scmp.le.s32.totalorder 2, %s14
    // Predicated region
    $region57: #{subsampling_forward.1} parent=5 // pred_check
      %p851 = pneg %p850
    $region58: #{subsampling_forward.1} parent=5 // pred_check_branch
      %853 = sbr.rel (%p851) target = $region60
    $region59: #{subsampling_forward.1} parent=5 // pred_region
      %s854 = ssub.s32 %s14, 2
      // Predicated region
      $region61: #{subsampling_forward.1} parent=59 // pred_check
        %p855 = pneg %p216
      $region62: #{subsampling_forward.1} parent=59 // pred_check_branch
        %857 = sbr.rel (%p855) target = $region64
      $region63: #{subsampling_forward.1} parent=59 // pred_region
        %p858 = scmp.lt.s32.totalorder %s20, 1
        %s859 = scalar_select %p858, %s20, 1
        %s860 = smul.addr %s859, 4
        %s861 = scalar_lea.vmem %s8, %s860
      $region64: #{subsampling_forward.1} parent=59 // pred_fallthru
        _
    $region60: #{subsampling_forward.1} parent=5 // pred_fallthru
      _
  $region6: #{subsampling_forward.1} parent=0 // loop_footer
    %s18 = sadd.s32 1, %s14
  $region7: #{subsampling_forward.1} parent=0 // loop_footer_branch
    %13 = sbr.rel target = $region3
  $region8: #{subsampling_forward.1} parent=0 // loop_exit
    _

</llo_original>
